<compile_context>
chip_gen: v5e
topology: v5e:2x2
jax: 0.10.0
libtpu: 0.0.40
codegen_flags: <defaults>
</compile_context>

<pallas_src>
import functools

import jax
import jax.numpy as jnp
from jax.experimental import pallas as pl
from jax.experimental.pallas import tpu as pltpu


def _round_up(x, m):
    return (x + m - 1) // m * m


def _mlp_kernel(x_ref, w1_ref, b1_ref, w2_ref, b2_ref, w3_ref, b3_ref, o_ref):
    # All three matmuls + ReLUs fused in one kernel invocation.
    # Matmul operands stay in their native (bf16) dtype -> native MXU path;
    # accumulation is f32 (preferred_element_type); bias-add / ReLU in f32.
    h1 = jnp.dot(x_ref[...], w1_ref[...],
                 preferred_element_type=jnp.float32) + b1_ref[...]
    h1 = jnp.maximum(h1, 0.0)
    h2 = jnp.dot(h1.astype(w2_ref.dtype), w2_ref[...],
                 preferred_element_type=jnp.float32) + b2_ref[...]
    h2 = jnp.maximum(h2, 0.0)
    out = jnp.dot(h2.astype(w3_ref.dtype), w3_ref[...],
                  preferred_element_type=jnp.float32) + b3_ref[...]
    o_ref[...] = out.astype(o_ref.dtype)


@functools.partial(jax.jit, static_argnames=("tb", "compute_dtype"))
def shallow_net_forward(x, w1, b1, w2, b2, w3, b3, *, tb=None,
                        compute_dtype=jnp.bfloat16):
    """x: (B, l1); wK: (in, out); bK: (1, out). Returns (B, l4) in x.dtype."""
    B, l1 = x.shape
    l2 = w1.shape[1]
    l3 = w2.shape[1]
    l4 = w3.shape[1]
    out_dtype = x.dtype

    # --- Lane-dense output: pad last layer to a multiple of 128 columns. ---
    l4_pad = _round_up(l4, 128)
    if l4_pad != l4:
        w3 = jnp.pad(w3, ((0, 0), (0, l4_pad - l4)))
        b3 = jnp.pad(b3, ((0, 0), (0, l4_pad - l4)))

    # --- Batch tile selection (large tiles amortize the ~0.35us/step overhead). ---
    # tb kept a multiple of 16 (bf16 sublane packing). For very large batches the
    # default of 512 keeps double-buffered x/out tiles comfortably inside the
    # scoped VMEM defaults on v5e (16 MiB) and v7x (32 MiB of 64 MiB physical).
    B_pad = _round_up(B, 16)
    if tb is None:
        tb = min(512, B_pad)
    tb = _round_up(min(tb, B_pad), 16)
    B_pad = _round_up(B_pad, tb)
    if B_pad != B:
        x = jnp.pad(x, ((0, B_pad - B), (0, 0)))

    # --- Cast matmul operands to bf16 (MXU native); biases stay f32. ---
    x_c = x.astype(compute_dtype)
    w1_c = w1.astype(compute_dtype)
    w2_c = w2.astype(compute_dtype)
    w3_c = w3.astype(compute_dtype)
    b1_f = b1.astype(jnp.float32)
    b2_f = b2.astype(jnp.float32)
    b3_f = b3.astype(jnp.float32)

    grid = (B_pad // tb,)

    # Weight/bias blocks cover the full arrays (block_shape == array shape), so the
    # (8,128) tiling constraint does not apply to them; only the batch axis is tiled.
    in_specs = [
        pl.BlockSpec((tb, l1), lambda i: (i, 0)),       # x tile (streamed)
        pl.BlockSpec((l1, l2), lambda i: (0, 0)),       # w1 (resident)
        pl.BlockSpec((1, l2), lambda i: (0, 0)),        # b1
        pl.BlockSpec((l2, l3), lambda i: (0, 0)),       # w2
        pl.BlockSpec((1, l3), lambda i: (0, 0)),        # b2
        pl.BlockSpec((l3, l4_pad), lambda i: (0, 0)),   # w3 (padded to 128 lanes)
        pl.BlockSpec((1, l4_pad), lambda i: (0, 0)),    # b3 (padded)
    ]
    # Lane-dense output slab (last dim a multiple of 128) -> unmasked vst.
    out_specs = pl.BlockSpec((tb, l4_pad), lambda i: (i, 0))

    out = pl.pallas_call(
        _mlp_kernel,
        out_shape=jax.ShapeDtypeStruct((B_pad, l4_pad), out_dtype),
        grid_spec=pltpu.PrefetchScalarGridSpec(
            num_scalar_prefetch=0,
            grid=grid,
            in_specs=in_specs,
            out_specs=out_specs,
        ),
        compiler_params=pltpu.CompilerParams(
            dimension_semantics=("parallel",),
        ),
    )(x_c, w1_c, b1_f, w2_c, b2_f, w3_c, b3_f)

    # Slice away batch / lane padding.
    return out[:B, :l4]


def init_linear_params(key, fan_in, fan_out):
    """Deterministic init mimicking torch.nn.Linear default (uniform +/- 1/sqrt(fan_in)).
    Weight returned pre-transposed as (fan_in, fan_out)."""
    kw, kb = jax.random.split(key)
    bound = 1.0 / jnp.sqrt(jnp.float32(fan_in))
    w = jax.random.uniform(kw, (fan_in, fan_out), jnp.float32, -bound, bound)
    b = jax.random.uniform(kb, (1, fan_out), jnp.float32, -bound, bound)
    return w, b


def _ref_forward(x, w1, b1, w2, b2, w3, b3, cdt=jnp.bfloat16):
    """Pure-JAX reference with the same mixed precision as the kernel."""
    h = jnp.dot(x.astype(cdt), w1.astype(cdt),
                preferred_element_type=jnp.float32) + b1
    h = jnp.maximum(h, 0.0)
    h = jnp.dot(h.astype(cdt), w2.astype(cdt),
                preferred_element_type=jnp.float32) + b2
    h = jnp.maximum(h, 0.0)
    return jnp.dot(h.astype(cdt), w3.astype(cdt),
                   preferred_element_type=jnp.float32) + b3


if __name__ == "__main__":
    # ShallowNet(l1=32, l2=64, l3=32, l4=4), batch=8
    l1, l2, l3, l4 = 32, 64, 32, 4
    batch = 8

    key = jax.random.PRNGKey(0)
    kx, k1, k2, k3 = jax.random.split(key, 4)

    x = jax.random.normal(kx, (batch, l1), jnp.float32)
    w1, b1 = init_linear_params(k1, l1, l2)
    w2, b2 = init_linear_params(k2, l2, l3)
    w3, b3 = init_linear_params(k3, l3, l4)

    out = shallow_net_forward(x, w1, b1, w2, b2, w3, b3)
    out = jax.block_until_ready(out)
    assert out.shape == (batch, l4)

    # Reference with matching bf16-matmul / f32-accumulate precision.
    ref = _ref_forward(x, w1, b1, w2, b2, w3, b3).astype(out.dtype)
    assert jnp.allclose(out, ref, atol=1e-3, rtol=1e-3), "mismatch vs bf16 reference"

    # Loose sanity check against the full-f32 math of the original module.
    h1 = jnp.maximum(x @ w1 + b1, 0.0)
    h2 = jnp.maximum(h1 @ w2 + b2, 0.0)
    ref_f32 = h2 @ w3 + b3
    assert jnp.allclose(out, ref_f32, atol=5e-2, rtol=5e-2), "mismatch vs f32 reference"

    # Exercise the padding + multi-tile (grid > 1, parallel axis) path:
    # batch not a multiple of the tile, tile smaller than the padded batch.
    batch2 = 300
    x2 = jax.random.normal(kx, (batch2, l1), jnp.float32)
    out2 = jax.block_until_ready(
        shallow_net_forward(x2, w1, b1, w2, b2, w3, b3, tb=128))
    ref2 = _ref_forward(x2, w1, b1, w2, b2, w3, b3).astype(out2.dtype)
    assert out2.shape == (batch2, l4)
    assert jnp.allclose(out2, ref2, atol=1e-3, rtol=1e-3), "mismatch on tiled path"

    print("KERNEL_OK")
</pallas_src>

<mosaic_0001>
module attributes {stable_mosaic.version = 11 : i64} {
  func.func @_mlp_kernel(%arg0: i32, %arg1: memref<16x32xbf16, #tpu.memory_space<vmem>>, %arg2: memref<32x64xbf16, #tpu.memory_space<vmem>>, %arg3: memref<1x64xf32, #tpu.memory_space<vmem>>, %arg4: memref<64x32xbf16, #tpu.memory_space<vmem>>, %arg5: memref<1x32xf32, #tpu.memory_space<vmem>>, %arg6: memref<32x128xbf16, #tpu.memory_space<vmem>>, %arg7: memref<1x128xf32, #tpu.memory_space<vmem>>, %arg8: memref<16x128xf32, #tpu.memory_space<vmem>>) attributes {dimension_semantics = [#tpu.dimension_semantics<parallel>], iteration_bounds = array<i64: 1>, scalar_prefetch = 0 : i64, scratch_operands = 0 : i64, tpu.core_type = #tpu.core_type<tc>, window_params = [{transform_indices = @transform_0, window_bounds = array<i64: 16, 32>}, {pipeline_mode = #tpu.pipeline_mode<synchronous>, transform_indices = @transform_1, window_bounds = array<i64: 32, 64>}, {pipeline_mode = #tpu.pipeline_mode<synchronous>, transform_indices = @transform_2, window_bounds = array<i64: 1, 64>}, {pipeline_mode = #tpu.pipeline_mode<synchronous>, transform_indices = @transform_3, window_bounds = array<i64: 64, 32>}, {pipeline_mode = #tpu.pipeline_mode<synchronous>, transform_indices = @transform_4, window_bounds = array<i64: 1, 32>}, {pipeline_mode = #tpu.pipeline_mode<synchronous>, transform_indices = @transform_5, window_bounds = array<i64: 32, 128>}, {pipeline_mode = #tpu.pipeline_mode<synchronous>, transform_indices = @transform_6, window_bounds = array<i64: 1, 128>}, {transform_indices = @transform_7, window_bounds = array<i64: 16, 128>}]} {
    %c0 = arith.constant 0 : index
    %c0_0 = arith.constant 0 : index
    %0 = vector.load %arg1[%c0, %c0_0] : memref<16x32xbf16, #tpu.memory_space<vmem>>, vector<16x32xbf16>
    %c0_1 = arith.constant 0 : index
    %c0_2 = arith.constant 0 : index
    %1 = vector.load %arg2[%c0_1, %c0_2] : memref<32x64xbf16, #tpu.memory_space<vmem>>, vector<32x64xbf16>
    %cst = arith.constant dense<0.000000e+00> : vector<16x64xf32>
    %2 = tpu.matmul %0, %1, %cst {dimension_numbers = #tpu.dot_dimension_numbers<[1], [0], [0], [1], [0, 0, 1, 1], [], []>} : vector<16x32xbf16>, vector<32x64xbf16>, vector<16x64xf32> -> vector<16x64xf32>
    %c0_3 = arith.constant 0 : index
    %c0_4 = arith.constant 0 : index
    %3 = vector.load %arg3[%c0_3, %c0_4] : memref<1x64xf32, #tpu.memory_space<vmem>>, vector<1x64xf32>
    %4 = vector.broadcast %3 : vector<1x64xf32> to vector<16x64xf32>
    %5 = arith.addf %2, %4 : vector<16x64xf32>
    %cst_5 = arith.constant 0.000000e+00 : f32
    %6 = vector.broadcast %cst_5 : f32 to vector<16x64xf32>
    %7 = arith.maximumf %5, %6 : vector<16x64xf32>
    %8 = arith.truncf %7 : vector<16x64xf32> to vector<16x64xbf16>
    %c0_6 = arith.constant 0 : index
    %c0_7 = arith.constant 0 : index
    %9 = vector.load %arg4[%c0_6, %c0_7] : memref<64x32xbf16, #tpu.memory_space<vmem>>, vector<64x32xbf16>
    %cst_8 = arith.constant dense<0.000000e+00> : vector<16x32xf32>
    %10 = tpu.matmul %8, %9, %cst_8 {dimension_numbers = #tpu.dot_dimension_numbers<[1], [0], [0], [1], [0, 0, 1, 1], [], []>} : vector<16x64xbf16>, vector<64x32xbf16>, vector<16x32xf32> -> vector<16x32xf32>
    %c0_9 = arith.constant 0 : index
    %c0_10 = arith.constant 0 : index
    %11 = vector.load %arg5[%c0_9, %c0_10] : memref<1x32xf32, #tpu.memory_space<vmem>>, vector<1x32xf32>
    %12 = vector.broadcast %11 : vector<1x32xf32> to vector<16x32xf32>
    %13 = arith.addf %10, %12 : vector<16x32xf32>
    %cst_11 = arith.constant 0.000000e+00 : f32
    %14 = vector.broadcast %cst_11 : f32 to vector<16x32xf32>
    %15 = arith.maximumf %13, %14 : vector<16x32xf32>
    %16 = arith.truncf %15 : vector<16x32xf32> to vector<16x32xbf16>
    %c0_12 = arith.constant 0 : index
    %c0_13 = arith.constant 0 : index
    %17 = vector.load %arg6[%c0_12, %c0_13] : memref<32x128xbf16, #tpu.memory_space<vmem>>, vector<32x128xbf16>
    %cst_14 = arith.constant dense<0.000000e+00> : vector<16x128xf32>
    %18 = tpu.matmul %16, %17, %cst_14 {dimension_numbers = #tpu.dot_dimension_numbers<[1], [0], [0], [1], [0, 0, 1, 1], [], []>} : vector<16x32xbf16>, vector<32x128xbf16>, vector<16x128xf32> -> vector<16x128xf32>
    %c0_15 = arith.constant 0 : index
    %c0_16 = arith.constant 0 : index
    %19 = vector.load %arg7[%c0_15, %c0_16] : memref<1x128xf32, #tpu.memory_space<vmem>>, vector<1x128xf32>
    %20 = vector.broadcast %19 : vector<1x128xf32> to vector<16x128xf32>
    %21 = arith.addf %18, %20 : vector<16x128xf32>
    %c0_17 = arith.constant 0 : index
    %c0_18 = arith.constant 0 : index
    %22 = vector.load %arg8[%c0_17, %c0_18] : memref<16x128xf32, #tpu.memory_space<vmem>>, vector<16x128xf32>
    tpu.vector_store %arg8[%c0_17, %c0_18], %21 {strides = array<i32>} : memref<16x128xf32, #tpu.memory_space<vmem>>, vector<16x128xf32>,
    return
  }
  func.func @transform_0(%arg0: i32) -> (i32, i32) {
    %c0_i32 = arith.constant 0 : i32
    %c0_i32_0 = arith.constant 0 : i32
    return %arg0, %c0_i32 : i32, i32
  }
  func.func @transform_1(%arg0: i32) -> (i32, i32) {
    %c0_i32 = arith.constant 0 : i32
    %c0_i32_0 = arith.constant 0 : i32
    %c0_i32_1 = arith.constant 0 : i32
    return %c0_i32, %c0_i32_0 : i32, i32
  }
  func.func @transform_2(%arg0: i32) -> (i32, i32) {
    %c0_i32 = arith.constant 0 : i32
    %c0_i32_0 = arith.constant 0 : i32
    %c0_i32_1 = arith.constant 0 : i32
    return %c0_i32, %c0_i32_0 : i32, i32
  }
  func.func @transform_3(%arg0: i32) -> (i32, i32) {
    %c0_i32 = arith.constant 0 : i32
    %c0_i32_0 = arith.constant 0 : i32
    %c0_i32_1 = arith.constant 0 : i32
    return %c0_i32, %c0_i32_0 : i32, i32
  }
  func.func @transform_4(%arg0: i32) -> (i32, i32) {
    %c0_i32 = arith.constant 0 : i32
    %c0_i32_0 = arith.constant 0 : i32
    %c0_i32_1 = arith.constant 0 : i32
    return %c0_i32, %c0_i32_0 : i32, i32
  }
  func.func @transform_5(%arg0: i32) -> (i32, i32) {
    %c0_i32 = arith.constant 0 : i32
    %c0_i32_0 = arith.constant 0 : i32
    %c0_i32_1 = arith.constant 0 : i32
    return %c0_i32, %c0_i32_0 : i32, i32
  }
  func.func @transform_6(%arg0: i32) -> (i32, i32) {
    %c0_i32 = arith.constant 0 : i32
    %c0_i32_0 = arith.constant 0 : i32
    %c0_i32_1 = arith.constant 0 : i32
    return %c0_i32, %c0_i32_0 : i32, i32
  }
  func.func @transform_7(%arg0: i32) -> (i32, i32) {
    %c0_i32 = arith.constant 0 : i32
    %c0_i32_0 = arith.constant 0 : i32
    return %arg0, %c0_i32 : i32, i32
  }
}

</mosaic_0001>

<llo_original>
// kernel: shallow_net_forward.1
$region0: #{shallow_net_forward.1}
  #allocation0 [shape = 'u32[]', space=smem, size = 0x4, offset = 0x4, fixed_abs, tag = 'smem constant byte address 0x4 - core index']
  #allocation1 [shape = 'u32[72,128]{1,0:T(1,128)}', space=vmem, size = 0x9000, scoped, tag = 'internal scratch']
  %s0 = inlined_call_operand.vmem [shape: bf16[16,32], index: 0, kind: input, shape index: {}]
  %s1 = inlined_call_operand.vmem [shape: bf16[32,64], index: 1, kind: input, shape index: {}]
  %s2 = inlined_call_operand.vmem [shape: f32[1,64], index: 2, kind: input, shape index: {}]
  %s3 = inlined_call_operand.vmem [shape: bf16[64,32], index: 3, kind: input, shape index: {}]
  %s4 = inlined_call_operand.vmem [shape: f32[1,32], index: 4, kind: input, shape index: {}]
  %s5 = inlined_call_operand.vmem [shape: bf16[32,128], index: 5, kind: input, shape index: {}]
  %s6 = inlined_call_operand.vmem [shape: f32[1,128], index: 6, kind: input, shape index: {}]
  %s7 = inlined_call_operand.vmem [shape: f32[16,128], index: 7, kind: output, shape index: {}]
  %s8 = sld [smem:[#allocation0]]
  $region38: #{shallow_net_forward.1} parent=0
    _
  %s10 = ssub.s32 1, %s8
  %s11 = scalar_select 0, %s10, %s8
  // Predicated region
  $region2: #{shallow_net_forward.1} parent=0 // pred_check
    _
  $region3: #{shallow_net_forward.1} parent=0 // pred_check_branch
    %13 = sbr.rel (0) target = $region5
  $region4: #{shallow_net_forward.1} parent=0 // pred_region
    _
  $region5: #{shallow_net_forward.1} parent=0 // pred_fallthru
    _
  // Predicated region
  $region6: #{shallow_net_forward.1} parent=0 // pred_check
    _
  $region7: #{shallow_net_forward.1} parent=0 // pred_check_branch
    %15 = sbr.rel (0) target = $region9
  $region8: #{shallow_net_forward.1} parent=0 // pred_region
    _
  $region9: #{shallow_net_forward.1} parent=0 // pred_fallthru
    _
  // Predicated region
  $region10: #{shallow_net_forward.1} parent=0 // pred_check
    _
  $region11: #{shallow_net_forward.1} parent=0 // pred_check_branch
    %17 = sbr.rel (0) target = $region13
  $region12: #{shallow_net_forward.1} parent=0 // pred_region
    _
  $region13: #{shallow_net_forward.1} parent=0 // pred_fallthru
    _
  // Predicated region
  $region14: #{shallow_net_forward.1} parent=0 // pred_check
    _
  $region15: #{shallow_net_forward.1} parent=0 // pred_check_branch
    %19 = sbr.rel (0) target = $region17
  $region16: #{shallow_net_forward.1} parent=0 // pred_region
    _
  $region17: #{shallow_net_forward.1} parent=0 // pred_fallthru
    _
  // Predicated region
  $region18: #{shallow_net_forward.1} parent=0 // pred_check
    _
  $region19: #{shallow_net_forward.1} parent=0 // pred_check_branch
    %21 = sbr.rel (0) target = $region21
  $region20: #{shallow_net_forward.1} parent=0 // pred_region
    _
  $region21: #{shallow_net_forward.1} parent=0 // pred_fallthru
    _
  // Predicated region
  $region22: #{shallow_net_forward.1} parent=0 // pred_check
    _
  $region23: #{shallow_net_forward.1} parent=0 // pred_check_branch
    %23 = sbr.rel (0) target = $region25
  $region24: #{shallow_net_forward.1} parent=0 // pred_region
    _
  $region25: #{shallow_net_forward.1} parent=0 // pred_fallthru
    _
  // Predicated region
  $region26: #{shallow_net_forward.1} parent=0 // pred_check
    _
  $region27: #{shallow_net_forward.1} parent=0 // pred_check_branch
    %25 = sbr.rel (0) target = $region29
  $region28: #{shallow_net_forward.1} parent=0 // pred_region
    _
  $region29: #{shallow_net_forward.1} parent=0 // pred_fallthru
    _
  %v27 = vld [vmem:[%s0] sm:$0xf]
  %v28 = vld [vmem:[%s0 + $0x4] sm:$0xf]
  %v29 = vld [vmem:[%s1] sm:$0xf]
  %v30 = vld [vmem:[%s1 + $0x4] sm:$0xf]
  %v31 = vld [vmem:[%s1 + $0x8] sm:$0xf]
  %v32 = vld [vmem:[%s1 + $0xc] sm:$0xf]
  %v33 = vld [vmem:[%s2] sm:$0x1]
  %v35 = vperm.slane %v33, 0
  %v39 = vunpack.c.l.b16 %v27
  %v40 = vunpack.c.l.b16 %v28
  %v41 = vpack.c.b16 %v40, %v39
  %v46 = vunpack.c.l.b16 %v29
  %v47 = vunpack.c.l.b16 %v30
  %v48 = vunpack.c.l.b16 %v31
  %v49 = vunpack.c.l.b16 %v32
  %v50 = vpack.c.b16 %v47, %v46
  %v51 = vpack.c.b16 %v49, %v48
  %vm54 = vcmask 261120
  %v56 = vsel %vm54, %v41, 0
  %58 = vmatpush.bf16.msra.mxu0 0
  %59 = vmatpush.bf16.msra.mxu0 0
  %60 = vmatpush.bf16.msra.mxu0 0
  %61 = vmatpush.bf16.msra.mxu0 0
  %62 = vmatpush.bf16.msra.mxu0 0
  %63 = vmatpush.bf16.msra.mxu0 0
  %64 = vmatpush.bf16.msra.mxu0 %v51
  %65 = vmatpush.bf16.msra.mxu0 %v50
  %66 = vmatmul.bf16.gmra.mxu0 %v56
  %v67 = vpop.f32.mrf.mxu0
  %v68 = vadd.f32 %v35, %v67
  %v69 = vpop.f32.mrf.mxu0
  %v70 = vadd.f32 %v35, %v69
  %71 = vdwg.mxu0
  %v72 = vmax.f32 %v68, 0.0
  %v73 = vmax.f32 %v70, 0.0
  %v74 = vpack.c.bf16 %v73, %v72
  %v75 = vld [vmem:[%s3] sm:$0xf]
  %v76 = vld [vmem:[%s3 + $0x4] sm:$0xf]
  %v77 = vld [vmem:[%s3 + $0x8] sm:$0xf]
  %v78 = vld [vmem:[%s3 + $0xc] sm:$0xf]
  %v79 = vld [vmem:[%s3 + $0x10] sm:$0xf]
  %v80 = vld [vmem:[%s3 + $0x14] sm:$0xf]
  %v81 = vld [vmem:[%s3 + $0x18] sm:$0xf]
  %v82 = vld [vmem:[%s3 + $0x1c] sm:$0xf]
  %v83 = vld [vmem:[%s4] sm:$0x1]
  %v85 = vperm.slane %v83, 0
  %v95 = vunpack.c.l.b16 %v75
  %v96 = vunpack.c.l.b16 %v76
  %v97 = vunpack.c.l.b16 %v77
  %v98 = vunpack.c.l.b16 %v78
  %v99 = vunpack.c.l.b16 %v79
  %v100 = vunpack.c.l.b16 %v80
  %v101 = vunpack.c.l.b16 %v81
  %v102 = vunpack.c.l.b16 %v82
  %v103 = vpack.c.b16 %v96, %v95
  %v104 = vpack.c.b16 %v98, %v97
  %v105 = vpack.c.b16 %v100, %v99
  %v106 = vpack.c.b16 %v102, %v101
  %vm111 = vcmask 523264
  %v113 = vsel %vm111, %v74, 0
  %115 = vmatpush.bf16.msra.mxu0 0
  %116 = vmatpush.bf16.msra.mxu0 0
  %117 = vmatpush.bf16.msra.mxu0 0
  %118 = vmatpush.bf16.msra.mxu0 0
  %119 = vmatpush.bf16.msra.mxu0 %v106
  %120 = vmatpush.bf16.msra.mxu0 %v105
  %121 = vmatpush.bf16.msra.mxu0 %v104
  %122 = vmatpush.bf16.msra.mxu0 %v103
  %123 = vmatmul.bf16.gmra.mxu0 %v113
  %v124 = vpop.f32.mrf.mxu0
  %v125 = vadd.f32 %v85, %v124
  %v126 = vpop.f32.mrf.mxu0
  %v127 = vadd.f32 %v85, %v126
  %128 = vdwg.mxu0
  %v129 = vmax.f32 %v125, 0.0
  %v130 = vmax.f32 %v127, 0.0
  %v131 = vpack.c.bf16 %v130, %v129
  %v132 = vld [vmem:[%s5] sm:$0xf]
  %v133 = vld [vmem:[%s5 + $0x4] sm:$0xf]
  %v134 = vld [vmem:[%s5 + $0x8] sm:$0xf]
  %v135 = vld [vmem:[%s5 + $0xc] sm:$0xf]
  %v136 = vld [vmem:[%s6] sm:$0x1]
  %v138 = vperm.slane %v136, 0
  %v144 = vunpack.c.l.b16 %v132
  %v145 = vunpack.c.l.b16 %v133
  %v146 = vunpack.c.l.b16 %v134
  %v147 = vunpack.c.l.b16 %v135
  %v148 = vpack.c.b16 %v145, %v144
  %v149 = vpack.c.b16 %v147, %v146
  %v153 = vsel %vm54, %v131, 0
  %155 = vmatpush.bf16.msra.mxu0 0
  %156 = vmatpush.bf16.msra.mxu0 0
  %157 = vmatpush.bf16.msra.mxu0 0
  %158 = vmatpush.bf16.msra.mxu0 0
  %159 = vmatpush.bf16.msra.mxu0 0
  %160 = vmatpush.bf16.msra.mxu0 0
  %161 = vmatpush.bf16.msra.mxu0 %v149
  %162 = vmatpush.bf16.msra.mxu0 %v148
  %163 = vmatmul.bf16.gmra.mxu0 %v153
  %v164 = vpop.f32.mrf.mxu0
  %v165 = vadd.f32 %v138, %v164
  %v166 = vpop.f32.mrf.mxu0
  %v167 = vadd.f32 %v138, %v166
  %168 = vdwg.mxu0
  %169 = vst [vmem:[%s7] sm:$0xff] %v165
  %170 = vst [vmem:[%s7 + $0x8] sm:$0xff] %v167
  // Predicated region
  $region30: #{shallow_net_forward.1} parent=0 // pred_check
    _
  $region31: #{shallow_net_forward.1} parent=0 // pred_check_branch
    %172 = sbr.rel (0) target = $region33
  $region32: #{shallow_net_forward.1} parent=0 // pred_region
    _
  $region33: #{shallow_net_forward.1} parent=0 // pred_fallthru
    _
  // Predicated region
  $region34: #{shallow_net_forward.1} parent=0 // pred_check
    _
  $region35: #{shallow_net_forward.1} parent=0 // pred_check_branch
    %174 = sbr.rel (0) target = $region37
  $region36: #{shallow_net_forward.1} parent=0 // pred_region
    _
  $region37: #{shallow_net_forward.1} parent=0 // pred_fallthru
    _

</llo_original>
